<compile_context>
chip_gen: v6e
topology: v6e:2x2x1
jax: 0.10.0
libtpu: 0.0.40
codegen_flags: <defaults>
</compile_context>

<pallas_src>
import functools

import jax
import jax.numpy as jnp
from jax.experimental import pallas as pl
from jax.experimental.pallas import tpu as pltpu

BN_EPS = 1e-5


def _round_up(a: int, m: int) -> int:
    return ((a + m - 1) // m) * m


def _cdiv(a: int, b: int) -> int:
    return (a + b - 1) // b


# --------------------------------------------------------------------------- #
# Kernel
# --------------------------------------------------------------------------- #
def global_sa_kernel(x_ref,                                 # (TP, Cin) point tile
                     w1_ref, b1_ref,                        # layer 1
                     w2_ref, b2_ref, s2_ref, t2_ref,        # layer 2 (BN1 folded) + BN2 affine
                     out_ref,                               # (G, 8, C2P) per-graph-group block
                     *, grp, pchunk, n_chunks):
    # ---- Layer 1: Linear + bias + ReLU (single stacked W1 over [x, pos]) ----
    a1 = jnp.maximum(
        jnp.dot(x_ref[...], w1_ref[...], preferred_element_type=jnp.float32)
        + b1_ref[...], 0.0)

    # ---- Layer 2: Linear (BN1 folded) + bias + ReLU, BN2 as scale+shift ----
    z2 = jnp.dot(a1.astype(w2_ref.dtype), w2_ref[...],
                 preferred_element_type=jnp.float32) + b2_ref[...]
    h = jnp.maximum(z2, 0.0) * s2_ref[...] + t2_ref[...]    # (TP, C2P), f32

    # ---- Segmented max: rows are graph-major, `pchunk` padded rows per graph ----
    # (padding rows duplicate real points, so no masking is needed). The reshape keeps
    # (8, C2P) vreg tiles intact; the reduce over axis 1 is pure elementwise VPU max.
    hg = h.reshape(grp, pchunk // 8, 8, h.shape[-1])
    m = jnp.max(hg, axis=1)                                 # (G, 8, C2P) partial max

    if n_chunks == 1:
        out_ref[...] = m
    else:
        t = pl.program_id(1)

        @pl.when(t == 0)
        def _():
            out_ref[...] = m

        @pl.when(t > 0)
        def _():
            out_ref[...] = jnp.maximum(out_ref[...], m)


# --------------------------------------------------------------------------- #
# Parameter folding (eval-mode BatchNorm)
# --------------------------------------------------------------------------- #
def _fold_params(p, lane_pad=128):
    """Fold BN1 into the layer-2 Linear; reduce BN2 to per-channel (s2, t2).
    Output channels are zero-padded to a multiple of 128 lanes."""
    s1 = p["g1"][0] * jax.lax.rsqrt(p["v1"][0] + BN_EPS)    # (C1,)
    t1 = p["be1"][0] - p["m1"][0] * s1                      # (C1,)
    s2 = p["g2"][0] * jax.lax.rsqrt(p["v2"][0] + BN_EPS)    # (C2,)
    t2 = p["be2"][0] - p["m2"][0] * s2                      # (C2,)

    # z2 = (relu(z1)*s1 + t1) @ W2 + b2 = relu(z1) @ (s1[:,None]*W2) + (t1 @ W2 + b2)
    w2f = p["w2"] * s1[:, None]                             # (C1, C2)
    b2f = t1 @ p["w2"] + p["b2"][0]                         # (C2,)

    c2 = w2f.shape[1]
    c2p = _round_up(c2, lane_pad)
    pad = c2p - c2
    return dict(
        w1=p["w1"],                                         # (Cin, C1) stacked [x; pos]
        b1=p["b1"],                                         # (1, C1)
        w2=jnp.pad(w2f, ((0, 0), (0, pad))),                # (C1, C2P)
        b2=jnp.pad(b2f, (0, pad)).reshape(1, c2p),
        s2=jnp.pad(s2, (0, pad), constant_values=1.0).reshape(1, c2p),
        t2=jnp.pad(t2, (0, pad)).reshape(1, c2p),
    )


# --------------------------------------------------------------------------- #
# Wrapper
# --------------------------------------------------------------------------- #
def global_sa_module(x, pos, batch, params, num_graphs, *,
                     max_points_per_graph=None, tile_rows=2048,
                     compute_dtype=jnp.bfloat16):
    """GlobalSAModule forward.

    `batch` must hold SORTED, contiguous graph ids in [0, num_graphs) (PyG contract).
    Pass `max_points_per_graph` explicitly if calling under jit (otherwise it is read
    from the concrete `batch`).  `compute_dtype` affects only the point/weight stream;
    accumulation and pooling are always f32.
    """
    N, Cx = x.shape
    B = int(num_graphs)
    Cin = Cx + pos.shape[1]
    C2 = params["w2"].shape[1]

    fp = _fold_params(params)
    C2P = fp["w2"].shape[1]

    # Per-graph point counts / row starts (batch assumed sorted & contiguous).
    counts = jnp.zeros((B,), jnp.int32).at[batch.astype(jnp.int32)].add(1)
    starts = jnp.concatenate(
        [jnp.zeros((1,), jnp.int32), jnp.cumsum(counts)[:-1].astype(jnp.int32)])

    if max_points_per_graph is None:
        p_max = int(jnp.max(counts)) if N > 0 else 1   # needs concrete `batch`
    else:
        p_max = int(max_points_per_graph)
    p_max = max(p_max, 1)

    # ---- Static tiling: G graphs per grid step (small graphs) or T chunks per graph
    #      (very large graphs). TP = rows per grid step. ----
    p_row = _round_up(p_max, 8)                       # padded rows per graph
    cap = _round_up(max(min(tile_rows, 1 << 16), 8), 8)
    if p_row <= cap:
        grp = min(max(cap // p_row, 1), B)            # graphs packed per grid step
        n_chunks = 1
        pchunk = p_row
    else:
        grp = 1
        n_chunks = _cdiv(p_row, cap)
        pchunk = _round_up(_cdiv(p_row, n_chunks), 8)
        p_row = pchunk * n_chunks
    tp = grp * pchunk                                 # rows per grid step
    b_pad = _round_up(B, grp)
    nb = b_pad // grp
    grid = (nb, n_chunks)

    # ---- Gather points into graph-major padded layout (one XLA pass, fuses with the
    #      concat).  Padding rows duplicate the graph's last valid point so the max is
    #      unchanged; empty graphs are fixed up after the kernel. ----
    p_idx = jnp.arange(p_row, dtype=jnp.int32)
    local = jnp.minimum(p_idx[None, :], jnp.maximum(counts - 1, 0)[:, None])   # (B, p_row)
    rows = starts[:, None] + local
    rows = jnp.pad(rows, ((0, b_pad - B), (0, 0)))    # padded graphs -> row 0 (discarded)
    rows = jnp.clip(rows, 0, max(N - 1, 0))

    xin = jnp.concatenate([x, pos], axis=1).astype(compute_dtype)        # (N, Cin)
    xin_p = jnp.take(xin, rows.reshape(-1), axis=0)                      # (b_pad*p_row, Cin)

    w1 = fp["w1"].astype(compute_dtype)
    w2 = fp["w2"].astype(compute_dtype)

    kernel = functools.partial(global_sa_kernel, grp=grp, pchunk=pchunk,
                               n_chunks=n_chunks)

    pooled8 = pl.pallas_call(
        kernel,
        out_shape=jax.ShapeDtypeStruct((b_pad, 8, C2P), jnp.float32),
        grid=grid,
        in_specs=[
            pl.BlockSpec((tp, Cin), lambda gb, t: (gb * n_chunks + t, 0)),   # point tiles
            pl.BlockSpec(w1.shape, lambda gb, t: (0, 0)),                    # resident weights
            pl.BlockSpec(fp["b1"].shape, lambda gb, t: (0, 0)),
            pl.BlockSpec(w2.shape, lambda gb, t: (0, 0)),
            pl.BlockSpec(fp["b2"].shape, lambda gb, t: (0, 0)),
            pl.BlockSpec(fp["s2"].shape, lambda gb, t: (0, 0)),
            pl.BlockSpec(fp["t2"].shape, lambda gb, t: (0, 0)),
        ],
        out_specs=pl.BlockSpec((grp, 8, C2P), lambda gb, t: (gb, 0, 0)),
        compiler_params=pltpu.CompilerParams(
            dimension_semantics=("parallel", "arbitrary")),   # graphs parallel (v7x megacore)
    )(xin_p, w1, fp["b1"], w2, fp["b2"], fp["s2"], fp["t2"])

    # Finish the 8-sublane partial max and slice off channel / graph padding.
    pooled = jnp.max(pooled8[:B, :, :C2], axis=1)                        # (B, C2)
    # Graphs with zero points -> -inf rows (same as a masked max); guard upstream.
    pooled = jnp.where(counts[:, None] > 0, pooled, -jnp.inf)

    pos_out = jnp.zeros((B, 3), dtype=pos.dtype)
    batch_out = jnp.arange(B, dtype=batch.dtype)
    return pooled, pos_out, batch_out


# --------------------------------------------------------------------------- #
# Torch-style parameter init (Linear + fresh BatchNorm1d running stats)
# --------------------------------------------------------------------------- #
def init_params(key, channels):
    """channels e.g. [16, 32, 64] => 2 (Lin -> ReLU -> BN) blocks."""
    assert len(channels) == 3
    k1, k2, k3, k4 = jax.random.split(key, 4)
    c0, c1, c2 = channels

    def lin_init(kw, kb, cin, cout):
        bound = 1.0 / jnp.sqrt(cin)
        w = jax.random.uniform(kw, (cin, cout), jnp.float32, -bound, bound)
        b = jax.random.uniform(kb, (1, cout), jnp.float32, -bound, bound)
        return w, b

    w1, b1 = lin_init(k1, k2, c0, c1)
    w2, b2 = lin_init(k3, k4, c1, c2)
    return dict(
        w1=w1, b1=b1,
        g1=jnp.ones((1, c1), jnp.float32), be1=jnp.zeros((1, c1), jnp.float32),
        m1=jnp.zeros((1, c1), jnp.float32), v1=jnp.ones((1, c1), jnp.float32),
        w2=w2, b2=b2,
        g2=jnp.ones((1, c2), jnp.float32), be2=jnp.zeros((1, c2), jnp.float32),
        m2=jnp.zeros((1, c2), jnp.float32), v2=jnp.ones((1, c2), jnp.float32),
    )


if __name__ == "__main__":
    key = jax.random.PRNGKey(0)
    kx, kp, kparams = jax.random.split(key, 3)

    # Small shapes: 2 graphs x 16 points each, 13 feature channels + 3 pos dims.
    B = 2
    PTS_PER_GRAPH = 16
    N = B * PTS_PER_GRAPH
    C_FEAT = 13
    channels = [C_FEAT + 3, 32, 64]   # MLP([C+3, 32, 64])

    x = jax.random.normal(kx, (N, C_FEAT), dtype=jnp.float32)
    pos = jax.random.normal(kp, (N, 3), dtype=jnp.float32)
    batch = jnp.repeat(jnp.arange(B, dtype=jnp.int32), PTS_PER_GRAPH)

    params = init_params(kparams, channels)

    # Reference in plain JAX with the *unfolded* math (Lin -> ReLU -> BN, then masked max).
    def ref_forward(x, pos, batch, p, B):
        h = jnp.concatenate([x, pos], axis=1)
        h = jnp.maximum(h @ p["w1"] + p["b1"], 0.0)
        h = (h - p["m1"]) / jnp.sqrt(p["v1"] + BN_EPS) * p["g1"] + p["be1"]
        h = jnp.maximum(h @ p["w2"] + p["b2"], 0.0)
        h = (h - p["m2"]) / jnp.sqrt(p["v2"] + BN_EPS) * p["g2"] + p["be2"]
        mask = batch[None, :] == jnp.arange(B)[:, None]
        return jnp.max(jnp.where(mask[:, :, None], h[None], -jnp.inf), axis=1)

    ref = ref_forward(x, pos, batch, params, B)

    # Exact-precision path (f32 everywhere) — tight tolerance.
    out_x, out_pos, out_batch = global_sa_module(
        x, pos, batch, params, num_graphs=B, compute_dtype=jnp.float32)
    jax.block_until_ready((out_x, out_pos, out_batch))
    assert out_x.shape == (B, channels[-1])
    assert out_pos.shape == (B, 3)
    assert out_batch.shape == (B,)
    assert jnp.allclose(out_x, ref, atol=2e-4, rtol=2e-4)

    # Default fast path (bf16 point/weight stream, f32 accumulation & pooling).
    out_bf, _, _ = global_sa_module(x, pos, batch, params, num_graphs=B)
    jax.block_until_ready(out_bf)
    assert jnp.allclose(out_bf, ref, atol=5e-2, rtol=5e-2)

    print("KERNEL_OK")
</pallas_src>

<mosaic_0001>
module attributes {stable_mosaic.version = 11 : i64} {
  func.func @global_sa_kernel(%arg0: i32, %arg1: i32, %arg2: memref<32x16xf32, #tpu.memory_space<vmem>>, %arg3: memref<16x32xf32, #tpu.memory_space<vmem>>, %arg4: memref<1x32xf32, #tpu.memory_space<vmem>>, %arg5: memref<32x128xf32, #tpu.memory_space<vmem>>, %arg6: memref<1x128xf32, #tpu.memory_space<vmem>>, %arg7: memref<1x128xf32, #tpu.memory_space<vmem>>, %arg8: memref<1x128xf32, #tpu.memory_space<vmem>>, %arg9: memref<2x8x128xf32, #tpu.memory_space<vmem>>) attributes {dimension_semantics = [#tpu.dimension_semantics<parallel>, #tpu.dimension_semantics<arbitrary>], iteration_bounds = array<i64: 1, 1>, scalar_prefetch = 0 : i64, scratch_operands = 0 : i64, tpu.core_type = #tpu.core_type<tc>, window_params = [{transform_indices = @transform_0, window_bounds = array<i64: 32, 16>}, {pipeline_mode = #tpu.pipeline_mode<synchronous>, transform_indices = @transform_1, window_bounds = array<i64: 16, 32>}, {pipeline_mode = #tpu.pipeline_mode<synchronous>, transform_indices = @transform_2, window_bounds = array<i64: 1, 32>}, {pipeline_mode = #tpu.pipeline_mode<synchronous>, transform_indices = @transform_3, window_bounds = array<i64: 32, 128>}, {pipeline_mode = #tpu.pipeline_mode<synchronous>, transform_indices = @transform_4, window_bounds = array<i64: 1, 128>}, {pipeline_mode = #tpu.pipeline_mode<synchronous>, transform_indices = @transform_5, window_bounds = array<i64: 1, 128>}, {pipeline_mode = #tpu.pipeline_mode<synchronous>, transform_indices = @transform_6, window_bounds = array<i64: 1, 128>}, {transform_indices = @transform_7, window_bounds = array<i64: 2, 8, 128>}]} {
    %c0 = arith.constant 0 : index
    %c0_0 = arith.constant 0 : index
    %0 = vector.load %arg2[%c0, %c0_0] : memref<32x16xf32, #tpu.memory_space<vmem>>, vector<32x16xf32>
    %c0_1 = arith.constant 0 : index
    %c0_2 = arith.constant 0 : index
    %1 = vector.load %arg3[%c0_1, %c0_2] : memref<16x32xf32, #tpu.memory_space<vmem>>, vector<16x32xf32>
    %cst = arith.constant dense<0.000000e+00> : vector<32x32xf32>
    %2 = tpu.matmul %0, %1, %cst {dimension_numbers = #tpu.dot_dimension_numbers<[1], [0], [0], [1], [0, 0, 1, 1], [], []>} : vector<32x16xf32>, vector<16x32xf32>, vector<32x32xf32> -> vector<32x32xf32>
    %c0_3 = arith.constant 0 : index
    %c0_4 = arith.constant 0 : index
    %3 = vector.load %arg4[%c0_3, %c0_4] : memref<1x32xf32, #tpu.memory_space<vmem>>, vector<1x32xf32>
    %4 = vector.broadcast %3 : vector<1x32xf32> to vector<32x32xf32>
    %5 = arith.addf %2, %4 : vector<32x32xf32>
    %cst_5 = arith.constant 0.000000e+00 : f32
    %6 = vector.broadcast %cst_5 : f32 to vector<32x32xf32>
    %7 = arith.maximumf %5, %6 : vector<32x32xf32>
    %c0_6 = arith.constant 0 : index
    %c0_7 = arith.constant 0 : index
    %8 = vector.load %arg5[%c0_6, %c0_7] : memref<32x128xf32, #tpu.memory_space<vmem>>, vector<32x128xf32>
    %cst_8 = arith.constant dense<0.000000e+00> : vector<32x128xf32>
    %9 = tpu.matmul %7, %8, %cst_8 {dimension_numbers = #tpu.dot_dimension_numbers<[1], [0], [0], [1], [0, 0, 1, 1], [], []>} : vector<32x32xf32>, vector<32x128xf32>, vector<32x128xf32> -> vector<32x128xf32>
    %c0_9 = arith.constant 0 : index
    %c0_10 = arith.constant 0 : index
    %10 = vector.load %arg6[%c0_9, %c0_10] : memref<1x128xf32, #tpu.memory_space<vmem>>, vector<1x128xf32>
    %11 = vector.broadcast %10 : vector<1x128xf32> to vector<32x128xf32>
    %12 = arith.addf %9, %11 : vector<32x128xf32>
    %cst_11 = arith.constant 0.000000e+00 : f32
    %13 = vector.broadcast %cst_11 : f32 to vector<32x128xf32>
    %14 = arith.maximumf %12, %13 : vector<32x128xf32>
    %c0_12 = arith.constant 0 : index
    %c0_13 = arith.constant 0 : index
    %15 = vector.load %arg7[%c0_12, %c0_13] : memref<1x128xf32, #tpu.memory_space<vmem>>, vector<1x128xf32>
    %16 = vector.broadcast %15 : vector<1x128xf32> to vector<32x128xf32>
    %17 = arith.mulf %14, %16 : vector<32x128xf32>
    %c0_14 = arith.constant 0 : index
    %c0_15 = arith.constant 0 : index
    %18 = vector.load %arg8[%c0_14, %c0_15] : memref<1x128xf32, #tpu.memory_space<vmem>>, vector<1x128xf32>
    %19 = vector.broadcast %18 : vector<1x128xf32> to vector<32x128xf32>
    %20 = arith.addf %17, %19 : vector<32x128xf32>
    %21 = vector.shape_cast %20 : vector<32x128xf32> to vector<2x2x8x128xf32>
    %cst_16 = arith.constant dense<0xFF800000> : vector<2x8x128xf32>
    %22 = vector.multi_reduction <maximumf>, %21, %cst_16 [1] : vector<2x2x8x128xf32> to vector<2x8x128xf32>
    %c0_17 = arith.constant 0 : index
    %c0_18 = arith.constant 0 : index
    %c0_19 = arith.constant 0 : index
    %23 = vector.load %arg9[%c0_17, %c0_18, %c0_19] : memref<2x8x128xf32, #tpu.memory_space<vmem>>, vector<2x8x128xf32>
    tpu.vector_store %arg9[%c0_17, %c0_18, %c0_19], %22 {strides = array<i32>} : memref<2x8x128xf32, #tpu.memory_space<vmem>>, vector<2x8x128xf32>,
    return
  }
  func.func @transform_0(%arg0: i32, %arg1: i32) -> (i32, i32) {
    %c1_i32 = arith.constant 1 : i32
    %0 = arith.muli %arg0, %c1_i32 : i32
    %1 = arith.addi %0, %arg1 : i32
    %c0_i32 = arith.constant 0 : i32
    %c0_i32_0 = arith.constant 0 : i32
    return %1, %c0_i32 : i32, i32
  }
  func.func @transform_1(%arg0: i32, %arg1: i32) -> (i32, i32) {
    %c0_i32 = arith.constant 0 : i32
    %c0_i32_0 = arith.constant 0 : i32
    %c0_i32_1 = arith.constant 0 : i32
    return %c0_i32, %c0_i32_0 : i32, i32
  }
  func.func @transform_2(%arg0: i32, %arg1: i32) -> (i32, i32) {
    %c0_i32 = arith.constant 0 : i32
    %c0_i32_0 = arith.constant 0 : i32
    %c0_i32_1 = arith.constant 0 : i32
    return %c0_i32, %c0_i32_0 : i32, i32
  }
  func.func @transform_3(%arg0: i32, %arg1: i32) -> (i32, i32) {
    %c0_i32 = arith.constant 0 : i32
    %c0_i32_0 = arith.constant 0 : i32
    %c0_i32_1 = arith.constant 0 : i32
    return %c0_i32, %c0_i32_0 : i32, i32
  }
  func.func @transform_4(%arg0: i32, %arg1: i32) -> (i32, i32) {
    %c0_i32 = arith.constant 0 : i32
    %c0_i32_0 = arith.constant 0 : i32
    %c0_i32_1 = arith.constant 0 : i32
    return %c0_i32, %c0_i32_0 : i32, i32
  }
  func.func @transform_5(%arg0: i32, %arg1: i32) -> (i32, i32) {
    %c0_i32 = arith.constant 0 : i32
    %c0_i32_0 = arith.constant 0 : i32
    %c0_i32_1 = arith.constant 0 : i32
    return %c0_i32, %c0_i32_0 : i32, i32
  }
  func.func @transform_6(%arg0: i32, %arg1: i32) -> (i32, i32) {
    %c0_i32 = arith.constant 0 : i32
    %c0_i32_0 = arith.constant 0 : i32
    %c0_i32_1 = arith.constant 0 : i32
    return %c0_i32, %c0_i32_0 : i32, i32
  }
  func.func @transform_7(%arg0: i32, %arg1: i32) -> (i32, i32, i32) {
    %c0_i32 = arith.constant 0 : i32
    %c0_i32_0 = arith.constant 0 : i32
    %c0_i32_1 = arith.constant 0 : i32
    return %arg0, %c0_i32, %c0_i32_0 : i32, i32, i32
  }
}

</mosaic_0001>

<llo_original>
// kernel: tpu_custom_call.1
$region0: #{tpu_custom_call.1}
  #allocation0 [shape = 'u32[]', space=smem, size = 0x4, offset = 0x4, fixed_abs, tag = 'smem constant byte address 0x4 - core index']
  #allocation1 [shape = 'u32[144,128]{1,0:T(1,128)}', space=vmem, size = 0x12000, scoped, tag = 'internal scratch']
  %s0 = inlined_call_operand.vmem [shape: f32[32,16], index: 0, kind: input, shape index: {}]
  %s1 = inlined_call_operand.vmem [shape: f32[16,32], index: 1, kind: input, shape index: {}]
  %s2 = inlined_call_operand.vmem [shape: f32[1,32], index: 2, kind: input, shape index: {}]
  %s3 = inlined_call_operand.vmem [shape: f32[32,128], index: 3, kind: input, shape index: {}]
  %s4 = inlined_call_operand.vmem [shape: f32[1,128], index: 4, kind: input, shape index: {}]
  %s5 = inlined_call_operand.vmem [shape: f32[1,128], index: 5, kind: input, shape index: {}]
  %s6 = inlined_call_operand.vmem [shape: f32[1,128], index: 6, kind: input, shape index: {}]
  %s7 = inlined_call_operand.hbm [shape: f32[2,8,128], index: 7, kind: output, shape index: {}]
  %s8 = sld [smem:[#allocation0]]
  $region38: #{tpu_custom_call.1} parent=0
    _
  %s10 = ssub.s32 1, %s8
  %s11 = scalar_select 0, %s10, %s8
  $region1: #{tpu_custom_call.1} parent=0
    #allocation2 [shape = 'u8[8192]{0}', space=vmem, size = 0x2000, scoped, tag = 'output window, operand 0, single buffered']
    #allocation3 [shape = 's32[1]{0}', space=sflag, size = 0x4, scoped, tag = 'scoped memory for tpu_custom_call.1']
    %12 = vsyncpa [#allocation3], 0
    // Predicated region
    $region2: #{tpu_custom_call.1} parent=1 // pred_check
      _
    $region3: #{tpu_custom_call.1} parent=1 // pred_check_branch
      %14 = sbr.rel (0) target = $region5
    $region4: #{tpu_custom_call.1} parent=1 // pred_region
      %s15 = sadd.s32 0, 0
      %s16 = smul.u32 4, %s15
      %p17 = scmp.lt.s32.totalorder %s16, 3
      %s18 = scalar_select %p17, %s16, 3
      %s19 = smul.addr %s18, 8
      %s20 = scalar_lea.vmem %s0, %s19
      %s21 = sadd.s32 0, 0
      %s22 = smul.u32 4, %s21
    $region5: #{tpu_custom_call.1} parent=1 // pred_fallthru
      _
    // Predicated region
    $region6: #{tpu_custom_call.1} parent=1 // pred_check
      _
    $region7: #{tpu_custom_call.1} parent=1 // pred_check_branch
      %24 = sbr.rel (0) target = $region9
    $region8: #{tpu_custom_call.1} parent=1 // pred_region
      _
    $region9: #{tpu_custom_call.1} parent=1 // pred_fallthru
      _
    // Predicated region
    $region10: #{tpu_custom_call.1} parent=1 // pred_check
      _
    $region11: #{tpu_custom_call.1} parent=1 // pred_check_branch
      %26 = sbr.rel (0) target = $region13
    $region12: #{tpu_custom_call.1} parent=1 // pred_region
      _
    $region13: #{tpu_custom_call.1} parent=1 // pred_fallthru
      _
    // Predicated region
    $region14: #{tpu_custom_call.1} parent=1 // pred_check
      _
    $region15: #{tpu_custom_call.1} parent=1 // pred_check_branch
      %28 = sbr.rel (0) target = $region17
    $region16: #{tpu_custom_call.1} parent=1 // pred_region
      _
    $region17: #{tpu_custom_call.1} parent=1 // pred_fallthru
      _
    // Predicated region
    $region18: #{tpu_custom_call.1} parent=1 // pred_check
      _
    $region19: #{tpu_custom_call.1} parent=1 // pred_check_branch
      %30 = sbr.rel (0) target = $region21
    $region20: #{tpu_custom_call.1} parent=1 // pred_region
      _
    $region21: #{tpu_custom_call.1} parent=1 // pred_fallthru
      _
    // Predicated region
    $region22: #{tpu_custom_call.1} parent=1 // pred_check
      _
    $region23: #{tpu_custom_call.1} parent=1 // pred_check_branch
      %32 = sbr.rel (0) target = $region25
    $region24: #{tpu_custom_call.1} parent=1 // pred_region
      _
    $region25: #{tpu_custom_call.1} parent=1 // pred_fallthru
      _
    // Predicated region
    $region26: #{tpu_custom_call.1} parent=1 // pred_check
      _
    $region27: #{tpu_custom_call.1} parent=1 // pred_check_branch
      %34 = sbr.rel (0) target = $region29
    $region28: #{tpu_custom_call.1} parent=1 // pred_region
      _
    $region29: #{tpu_custom_call.1} parent=1 // pred_fallthru
      _
    %s35 = sadd.s32 0, 0
    %s36 = smul.u32 4, %s35
    %p37 = scmp.lt.s32.totalorder %s36, 3
    %s38 = scalar_select %p37, %s36, 3
    %s39 = smul.addr %s38, 8
    %s40 = scalar_lea.vmem %s0, %s39
    %s41 = sadd.s32 0, 0
    %s42 = smul.u32 4, %s41
    %p43 = scmp.lt.s32.totalorder %s42, 3
    %s44 = scalar_select %p43, %s42, 3
    %s45 = smul.addr %s44, 8
    %s46 = scalar_lea.vmem %s0, %s45
    %s47 = sadd.s32 0, 0
    %s48 = smul.u32 4, %s47
    %v49 = vld [vmem:[%s46] sm:$0xff]
    %v50 = vld [vmem:[%s46 + $0x8] sm:$0xff]
    %v51 = vld [vmem:[%s46 + $0x10] sm:$0xff]
    %v52 = vld [vmem:[%s46 + $0x18] sm:$0xff]
    %v53 = vld [vmem:[%s1] sm:$0xff]
    %v54 = vld [vmem:[%s1 + $0x8] sm:$0xff]
    %v55 = vld [vmem:[%s2] sm:$0x1]
    %v57 = vlaneseq
    %v58 = vshrl.u32 %v57, 7
    %v59 = vsub.s32 0, %v58
    %v60 = vrot.slane %v55, %v59
    %vm62 = vcmask 130048
    %v64 = vsel %vm62, %v49, 0
    %v67 = vsel %vm62, %v50, 0
    %v70 = vsel %vm62, %v51, 0
    %v73 = vsel %vm62, %v52, 0
    %75 = vmatprep.subr.mxu0 0.0
    %76 = vmatpush1.msra.mxu0 0.0
    %77 = vmatprep.subr.mxu0 0.0
    %78 = vmatpush1.msra.mxu0 0.0
    %79 = vmatprep.subr.mxu0 0.0
    %80 = vmatpush1.msra.mxu0 0.0
    %81 = vmatprep.subr.mxu0 0.0
    %82 = vmatpush1.msra.mxu0 0.0
    %83 = vmatprep.subr.mxu0 0.0
    %84 = vmatpush1.msra.mxu0 0.0
    %85 = vmatprep.subr.mxu0 0.0
    %86 = vmatpush1.msra.mxu0 0.0
    %87 = vmatprep.subr.mxu0 0.0
    %88 = vmatpush1.msra.mxu0 0.0
    %89 = vmatprep.subr.mxu0 0.0
    %90 = vmatpush1.msra.mxu0 0.0
    %91 = vmatprep.subr.mxu0 0.0
    %92 = vmatpush1.msra.mxu0 0.0
    %93 = vmatprep.subr.mxu0 0.0
    %94 = vmatpush1.msra.mxu0 0.0
    %95 = vmatprep.subr.mxu0 0.0
    %96 = vmatpush1.msra.mxu0 0.0
    %97 = vmatprep.subr.mxu0 0.0
    %98 = vmatpush1.msra.mxu0 0.0
    %99 = vmatprep.subr.mxu0 0.0
    %100 = vmatpush1.msra.mxu0 0.0
    %101 = vmatprep.subr.mxu0 0.0
    %102 = vmatpush1.msra.mxu0 0.0
    %103 = vmatprep.subr.mxu0 0.0
    %104 = vmatpush1.msra.mxu0 %v54
    %105 = vmatprep.subr.mxu0 0.0
    %106 = vmatpush1.msra.mxu0 %v53
    %107 = vmatprep.subr.mxu0 0.0
    %108 = vmatpush2.msra.mxu0 0.0
    %109 = vmatprep.subr.mxu0 0.0
    %110 = vmatpush2.msra.mxu0 0.0
    %111 = vmatprep.subr.mxu0 0.0
    %112 = vmatpush2.msra.mxu0 0.0
    %113 = vmatprep.subr.mxu0 0.0
    %114 = vmatpush2.msra.mxu0 0.0
    %115 = vmatprep.subr.mxu0 0.0
    %116 = vmatpush2.msra.mxu0 0.0
    %117 = vmatprep.subr.mxu0 0.0
    %118 = vmatpush2.msra.mxu0 0.0
    %119 = vmatprep.subr.mxu0 0.0
    %120 = vmatpush2.msra.mxu0 0.0
    %121 = vmatprep.subr.mxu0 0.0
    %122 = vmatpush2.msra.mxu0 0.0
    %123 = vmatprep.subr.mxu0 0.0
    %124 = vmatpush2.msra.mxu0 0.0
    %125 = vmatprep.subr.mxu0 0.0
    %126 = vmatpush2.msra.mxu0 0.0
    %127 = vmatprep.subr.mxu0 0.0
    %128 = vmatpush2.msra.mxu0 0.0
    %129 = vmatprep.subr.mxu0 0.0
    %130 = vmatpush2.msra.mxu0 0.0
    %131 = vmatprep.subr.mxu0 0.0
    %132 = vmatpush2.msra.mxu0 0.0
    %133 = vmatprep.subr.mxu0 0.0
    %134 = vmatpush2.msra.mxu0 0.0
    %135 = vmatprep.subr.mxu0 0.0
    %136 = vmatpush2.msra.mxu0 0.0
    %137 = vmatprep.subr.mxu0 0.0
    %138 = vmatpush2.msra.mxu0 0.0
    %139 = vmatprep.mubr.f32.mxu0 0.0
    %140 = vmatmul.mubr.f32.gmra.mxu0 %v64
    %v141 = vpop.f32.mrf.mxu0
    %v142 = vadd.f32 %v60, %v141
    %v143 = vpop.f32.mrf.mxu0
    %144 = vmatprep.mubr.f32.mxu0 0.0
    %145 = vmatmul.mubr.f32.gmra.mxu0 %v67
    %v146 = vpop.f32.mrf.mxu0
    %v147 = vadd.f32 %v60, %v146
    %v148 = vpop.f32.mrf.mxu0
    %149 = vmatprep.mubr.f32.mxu0 0.0
    %150 = vmatmul.mubr.f32.gmra.mxu0 %v70
    %v151 = vpop.f32.mrf.mxu0
    %v152 = vadd.f32 %v60, %v151
    %v153 = vpop.f32.mrf.mxu0
    %154 = vmatprep.mubr.f32.mxu0 0.0
    %155 = vmatmul.mubr.f32.gmra.mxu0 %v73
    %v156 = vpop.f32.mrf.mxu0
    %v157 = vadd.f32 %v60, %v156
    %v158 = vpop.f32.mrf.mxu0
    %159 = vdwg.mxu0
    %v160 = vmax.f32 %v142, 0.0
    %v161 = vmax.f32 %v147, 0.0
    %v162 = vmax.f32 %v152, 0.0
    %v163 = vmax.f32 %v157, 0.0
    %v164 = vld [vmem:[%s3] sm:$0xff]
    %v165 = vld [vmem:[%s3 + $0x8] sm:$0xff]
    %v166 = vld [vmem:[%s3 + $0x10] sm:$0xff]
    %v167 = vld [vmem:[%s3 + $0x18] sm:$0xff]
    %v168 = vld [vmem:[%s4] sm:$0x1]
    %v170 = vlaneseq
    %v171 = vshrl.u32 %v170, 7
    %v172 = vsub.s32 0, %v171
    %v173 = vrot.slane %v168, %v172
    %vm175 = vcmask 261120
    %v177 = vsel %vm175, %v160, 0
    %v180 = vsel %vm175, %v161, 0
    %v183 = vsel %vm175, %v162, 0
    %v186 = vsel %vm175, %v163, 0
    %188 = vmatprep.subr.mxu0 0.0
    %189 = vmatpush1.msra.mxu0 0.0
    %190 = vmatprep.subr.mxu0 0.0
    %191 = vmatpush1.msra.mxu0 0.0
    %192 = vmatprep.subr.mxu0 0.0
    %193 = vmatpush1.msra.mxu0 0.0
    %194 = vmatprep.subr.mxu0 0.0
    %195 = vmatpush1.msra.mxu0 0.0
    %196 = vmatprep.subr.mxu0 0.0
    %197 = vmatpush1.msra.mxu0 0.0
    %198 = vmatprep.subr.mxu0 0.0
    %199 = vmatpush1.msra.mxu0 0.0
    %200 = vmatprep.subr.mxu0 0.0
    %201 = vmatpush1.msra.mxu0 0.0
    %202 = vmatprep.subr.mxu0 0.0
    %203 = vmatpush1.msra.mxu0 0.0
    %204 = vmatprep.subr.mxu0 0.0
    %205 = vmatpush1.msra.mxu0 0.0
    %206 = vmatprep.subr.mxu0 0.0
    %207 = vmatpush1.msra.mxu0 0.0
    %208 = vmatprep.subr.mxu0 0.0
    %209 = vmatpush1.msra.mxu0 0.0
    %210 = vmatprep.subr.mxu0 0.0
    %211 = vmatpush1.msra.mxu0 0.0
    %212 = vmatprep.subr.mxu0 0.0
    %213 = vmatpush1.msra.mxu0 %v167
    %214 = vmatprep.subr.mxu0 0.0
    %215 = vmatpush1.msra.mxu0 %v166
    %216 = vmatprep.subr.mxu0 0.0
    %217 = vmatpush1.msra.mxu0 %v165
    %218 = vmatprep.subr.mxu0 0.0
    %219 = vmatpush1.msra.mxu0 %v164
    %220 = vmatprep.subr.mxu0 0.0
    %221 = vmatpush2.msra.mxu0 0.0
    %222 = vmatprep.subr.mxu0 0.0
    %223 = vmatpush2.msra.mxu0 0.0
    %224 = vmatprep.subr.mxu0 0.0
    %225 = vmatpush2.msra.mxu0 0.0
    %226 = vmatprep.subr.mxu0 0.0
    %227 = vmatpush2.msra.mxu0 0.0
    %228 = vmatprep.subr.mxu0 0.0
    %229 = vmatpush2.msra.mxu0 0.0
    %230 = vmatprep.subr.mxu0 0.0
    %231 = vmatpush2.msra.mxu0 0.0
    %232 = vmatprep.subr.mxu0 0.0
    %233 = vmatpush2.msra.mxu0 0.0
    %234 = vmatprep.subr.mxu0 0.0
    %235 = vmatpush2.msra.mxu0 0.0
    %236 = vmatprep.subr.mxu0 0.0
    %237 = vmatpush2.msra.mxu0 0.0
    %238 = vmatprep.subr.mxu0 0.0
    %239 = vmatpush2.msra.mxu0 0.0
    %240 = vmatprep.subr.mxu0 0.0
    %241 = vmatpush2.msra.mxu0 0.0
    %242 = vmatprep.subr.mxu0 0.0
    %243 = vmatpush2.msra.mxu0 0.0
    %244 = vmatprep.subr.mxu0 0.0
    %245 = vmatpush2.msra.mxu0 0.0
    %246 = vmatprep.subr.mxu0 0.0
    %247 = vmatpush2.msra.mxu0 0.0
    %248 = vmatprep.subr.mxu0 0.0
    %249 = vmatpush2.msra.mxu0 0.0
    %250 = vmatprep.subr.mxu0 0.0
    %251 = vmatpush2.msra.mxu0 0.0
    %252 = vmatprep.mubr.f32.mxu0 0.0
    %253 = vmatmul.mubr.f32.gmra.mxu0 %v177
    %v254 = vpop.f32.mrf.mxu0
    %v255 = vadd.f32 %v173, %v254
    %v256 = vpop.f32.mrf.mxu0
    %257 = vmatprep.mubr.f32.mxu0 0.0
    %258 = vmatmul.mubr.f32.gmra.mxu0 %v180
    %v259 = vpop.f32.mrf.mxu0
    %v260 = vadd.f32 %v173, %v259
    %v261 = vpop.f32.mrf.mxu0
    %262 = vmatprep.mubr.f32.mxu0 0.0
    %263 = vmatmul.mubr.f32.gmra.mxu0 %v183
    %v264 = vpop.f32.mrf.mxu0
    %v265 = vadd.f32 %v173, %v264
    %v266 = vpop.f32.mrf.mxu0
    %267 = vmatprep.mubr.f32.mxu0 0.0
    %268 = vmatmul.mubr.f32.gmra.mxu0 %v186
    %v269 = vpop.f32.mrf.mxu0
    %v270 = vadd.f32 %v173, %v269
    %v271 = vpop.f32.mrf.mxu0
    %272 = vdwg.mxu0
    %v273 = vmax.f32 %v255, 0.0
    %v274 = vmax.f32 %v260, 0.0
    %v275 = vmax.f32 %v265, 0.0
    %v276 = vmax.f32 %v270, 0.0
    %v277 = vld [vmem:[%s5] sm:$0x1]
    %v279 = vlaneseq
    %v280 = vshrl.u32 %v279, 7
    %v281 = vsub.s32 0, %v280
    %v282 = vrot.slane %v277, %v281
    %v284 = vmul.f32 %v273, %v282
    %v285 = vmul.f32 %v274, %v282
    %v286 = vmul.f32 %v275, %v282
    %v287 = vmul.f32 %v276, %v282
    %v288 = vld [vmem:[%s6] sm:$0x1]
    %v290 = vlaneseq
    %v291 = vshrl.u32 %v290, 7
    %v292 = vsub.s32 0, %v291
    %v293 = vrot.slane %v288, %v292
    %v295 = vadd.f32 %v284, %v293
    %v296 = vadd.f32 %v285, %v293
    %v297 = vadd.f32 %v286, %v293
    %v298 = vadd.f32 %v287, %v293
    %v299 = vmax.f32 %v295, %v296
    %v300 = vmax.f32 %v297, %v298
    %301 = vst [vmem:[#allocation2] sm:$0xff] %v299
    %302 = vst [vmem:[#allocation2 + $0x8] sm:$0xff] %v300
    // Predicated region
    $region30: #{tpu_custom_call.1} parent=1 // pred_check
      _
    $region31: #{tpu_custom_call.1} parent=1 // pred_check_branch
      %304 = sbr.rel (0) target = $region33
    $region32: #{tpu_custom_call.1} parent=1 // pred_region
      %s306 = ssub.s32 256, 256
      %307 = vsyncadd [#allocation3], %s306
      %s308 = sshll.u32 [#allocation2], 4
      %s309 = int_to_ptr.vmem [resolvable:$true] %s308
      %314 = dma.vmem_to_hbm [thread:$0]  %s309, 256, %s7, [#allocation3], 128, 128, 8
    $region33: #{tpu_custom_call.1} parent=1 // pred_fallthru
      _
    // Predicated region
    $region34: #{tpu_custom_call.1} parent=1 // pred_check
      _
    $region35: #{tpu_custom_call.1} parent=1 // pred_check_branch
      %316 = sbr.rel (0) target = $region37
    $region36: #{tpu_custom_call.1} parent=1 // pred_region
      %317 = dma.done [#allocation3], 256
    $region37: #{tpu_custom_call.1} parent=1 // pred_fallthru
      _
    %318 = vsyncpa [#allocation3], 1

</llo_original>
